<compile_context>
chip_gen: v6e
topology: v6e:2x2x1
jax: 0.10.0
libtpu: 0.0.40
codegen_flags: <defaults>
</compile_context>

<pallas_src>
import functools

import jax
import jax.numpy as jnp
from jax import lax
from jax.experimental import pallas as pl
from jax.experimental.pallas import tpu as pltpu

_LANES = 128
_NEG_BIG = -1e9   # sigmoid(-1e9) == 0 exactly in f32/bf16


def _cdiv(a, b):
    return -(-a // b)


def _dice_kernel(logits_ref, targets_ref, inter_ref, union_ref, *,
                 s_blk, s_total, n_blocks, needs_row_mask):
    j = pl.program_id(0)

    @pl.when(j == 0)
    def _():
        inter_ref[...] = jnp.zeros_like(inter_ref)
        union_ref[...] = jnp.zeros_like(union_ref)

    logits = logits_ref[...].astype(jnp.float32)      # [B, S_BLK, 128]
    targets = targets_ref[...].astype(jnp.float32)    # [B, S_BLK, 128]
    # Single-transcendental sigmoid: one EUP op instead of exp + divide.
    probs = 0.5 * (jnp.tanh(0.5 * logits) + 1.0)

    def accumulate(p, t):
        # Reduce over the S (sublane) axis only; the lane reduction is
        # deferred to the wrapper.  Accumulate into resident output blocks.
        inter_ref[...] += jnp.sum(p * t, axis=1)       # [B, 128]
        union_ref[...] += jnp.sum(p + t, axis=1)       # [B, 128]

    if needs_row_mask:
        is_last = j == (n_blocks - 1)

        @pl.when(jnp.logical_not(is_last))
        def _():
            accumulate(probs, targets)

        @pl.when(is_last)
        def _():
            # Only the final block has rows >= S (garbage VMEM); mask both
            # operands BEFORE any arithmetic so NaN/Inf never accumulates.
            row = lax.broadcasted_iota(jnp.int32, (s_blk, _LANES), 0)
            mask = ((j * s_blk + row) < s_total)[None, :, :]
            accumulate(jnp.where(mask, probs, 0.0),
                       jnp.where(mask, targets, 0.0))
    else:
        accumulate(probs, targets)


def dice_loss(logits, targets, smooth=1.0, *, s_blk=None):
    """Pallas implementation of DiceLoss.forward. Returns a scalar f32."""
    assert logits.shape == targets.shape
    B = logits.shape[0]

    # Flatten [B, C, H, W] -> [B, N] (same element order as torch .view).
    logits_flat = logits.reshape(B, -1)
    targets_flat = targets.reshape(B, -1)
    N = logits_flat.shape[1]
    assert N < 2**31, "per-row element count would overflow int32 indexing"

    # Reshape to the sublane-dense [B, S, 128] layout.  Only if N is not a
    # multiple of 128 do we pad; pad values are chosen so the tail
    # contributes exactly 0 to both sums (sigmoid(-1e9)=0, target pad=0),
    # so no in-kernel lane mask is needed.
    S = _cdiv(N, _LANES)
    if N % _LANES != 0:
        pad = S * _LANES - N
        logits_flat = jnp.pad(logits_flat, ((0, 0), (0, pad)),
                              constant_values=_NEG_BIG)
        targets_flat = jnp.pad(targets_flat, ((0, 0), (0, pad)))
    logits3 = logits_flat.reshape(B, S, _LANES)
    targets3 = targets_flat.reshape(B, S, _LANES)

    # Pick S_BLK: ~8 MiB of input per grid step across both streams
    # (=> ~16 MiB double-buffered).  Multiple of 32 so the block is layout
    # legal for f32 / bf16 / int8, or the full S extent.
    if s_blk is None:
        bytes_per_row = B * _LANES * (logits3.dtype.itemsize +
                                      targets3.dtype.itemsize)
        budget = 8 * 1024 * 1024
        s_blk = max(32, budget // bytes_per_row)
    if s_blk >= S:
        s_blk = S                       # full-extent block: always legal
    else:
        s_blk = max(32, (s_blk // 32) * 32)
        s_blk = min(s_blk, S)

    G = _cdiv(S, s_blk)                 # number of S-blocks (grid size)
    needs_row_mask = (S % s_blk != 0)

    # VMEM budget: 2 inputs x 2 buffers x block, plus tiny accumulators.
    block_bytes = B * s_blk * _LANES * (logits3.dtype.itemsize +
                                        targets3.dtype.itemsize)
    vmem_limit = min(max(32 * 1024 * 1024, 2 * block_bytes + 4 * 1024 * 1024),
                     64 * 1024 * 1024)

    kernel = functools.partial(
        _dice_kernel, s_blk=s_blk, s_total=S, n_blocks=G,
        needs_row_mask=needs_row_mask)

    inter_out, union_out = pl.pallas_call(
        kernel,
        out_shape=(
            jax.ShapeDtypeStruct((B, _LANES), jnp.float32),
            jax.ShapeDtypeStruct((B, _LANES), jnp.float32),
        ),
        grid_spec=pltpu.PrefetchScalarGridSpec(
            num_scalar_prefetch=0,
            grid=(G,),
            in_specs=[
                pl.BlockSpec((B, s_blk, _LANES), lambda j: (0, j, 0)),
                pl.BlockSpec((B, s_blk, _LANES), lambda j: (0, j, 0)),
            ],
            out_specs=[
                pl.BlockSpec((B, _LANES), lambda j: (0, 0)),
                pl.BlockSpec((B, _LANES), lambda j: (0, 0)),
            ],
        ),
        compiler_params=pltpu.CompilerParams(
            dimension_semantics=("arbitrary",),   # accumulation axis
            vmem_limit_bytes=vmem_limit,
        ),
    )(logits3, targets3)

    # Tiny epilogue (B*128 floats per output): lane reduce, dice, batch mean.
    intersection = jnp.sum(inter_out, axis=1)                # [B]
    union = jnp.sum(union_out, axis=1)                       # [B]
    dice = (2.0 * intersection + smooth) / (union + smooth)
    return 1.0 - jnp.mean(dice)


def dice_loss_ref(logits, targets, smooth=1.0):
    """Pure-JAX reference matching the PyTorch module."""
    probs = jax.nn.sigmoid(logits.astype(jnp.float32))
    B = logits.shape[0]
    p = probs.reshape(B, -1)
    t = targets.astype(jnp.float32).reshape(B, -1)
    inter = jnp.sum(p * t, axis=1)
    union = jnp.sum(p, axis=1) + jnp.sum(t, axis=1)
    dice = (2.0 * inter + smooth) / (union + smooth)
    return 1.0 - jnp.mean(dice)


if __name__ == "__main__":
    key = jax.random.PRNGKey(0)
    k1, k2 = jax.random.split(key)

    B, C, H, W = 2, 4, 16, 16
    logits = jax.random.normal(k1, (B, C, H, W), dtype=jnp.float32)
    # Binary ground-truth masks.
    targets = (jax.random.uniform(k2, (B, C, H, W)) > 0.5).astype(jnp.float32)

    loss = dice_loss(logits, targets, smooth=1.0)
    jax.block_until_ready(loss)

    ref = dice_loss_ref(logits, targets, smooth=1.0)
    assert jnp.allclose(loss, ref, atol=1e-4, rtol=1e-4), (loss, ref)

    print("KERNEL_OK")
</pallas_src>

<mosaic_0001>
module attributes {stable_mosaic.version = 11 : i64} {
  func.func @_dice_kernel(%arg0: i32, %arg1: memref<2x8x128xf32, #tpu.memory_space<vmem>>, %arg2: memref<2x8x128xf32, #tpu.memory_space<vmem>>, %arg3: memref<2x128xf32, #tpu.memory_space<vmem>>, %arg4: memref<2x128xf32, #tpu.memory_space<vmem>>) attributes {dimension_semantics = [#tpu.dimension_semantics<arbitrary>], iteration_bounds = array<i64: 1>, scalar_prefetch = 0 : i64, scratch_operands = 0 : i64, tpu.core_type = #tpu.core_type<tc>, window_params = [{transform_indices = @transform_0, window_bounds = array<i64: 2, 8, 128>}, {transform_indices = @transform_1, window_bounds = array<i64: 2, 8, 128>}, {pipeline_mode = #tpu.pipeline_mode<synchronous>, transform_indices = @transform_2, window_bounds = array<i64: 2, 128>}, {pipeline_mode = #tpu.pipeline_mode<synchronous>, transform_indices = @transform_3, window_bounds = array<i64: 2, 128>}]} {
    %c0_i32 = arith.constant 0 : i32
    %0 = arith.cmpi eq, %arg0, %c0_i32 : i32
    %1 = arith.extui %0 : i1 to i32
    %c0_i32_0 = arith.constant 0 : i32
    %2 = arith.cmpi ne, %1, %c0_i32_0 : i32
    scf.if %2 {
      %cst_18 = arith.constant 0.000000e+00 : f32
      %22 = vector.broadcast %cst_18 : f32 to vector<2x128xf32>
      %c0_19 = arith.constant 0 : index
      %c0_20 = arith.constant 0 : index
      %23 = vector.load %arg3[%c0_19, %c0_20] : memref<2x128xf32, #tpu.memory_space<vmem>>, vector<2x128xf32>
      tpu.vector_store %arg3[%c0_19, %c0_20], %22 {strides = array<i32>} : memref<2x128xf32, #tpu.memory_space<vmem>>, vector<2x128xf32>,
      %cst_21 = arith.constant 0.000000e+00 : f32
      %24 = vector.broadcast %cst_21 : f32 to vector<2x128xf32>
      %c0_22 = arith.constant 0 : index
      %c0_23 = arith.constant 0 : index
      %25 = vector.load %arg4[%c0_22, %c0_23] : memref<2x128xf32, #tpu.memory_space<vmem>>, vector<2x128xf32>
      tpu.vector_store %arg4[%c0_22, %c0_23], %24 {strides = array<i32>} : memref<2x128xf32, #tpu.memory_space<vmem>>, vector<2x128xf32>,
    } else {
    }
    %c0 = arith.constant 0 : index
    %c0_1 = arith.constant 0 : index
    %c0_2 = arith.constant 0 : index
    %3 = vector.load %arg1[%c0, %c0_1, %c0_2] : memref<2x8x128xf32, #tpu.memory_space<vmem>>, vector<2x8x128xf32>
    %c0_3 = arith.constant 0 : index
    %c0_4 = arith.constant 0 : index
    %c0_5 = arith.constant 0 : index
    %4 = vector.load %arg2[%c0_3, %c0_4, %c0_5] : memref<2x8x128xf32, #tpu.memory_space<vmem>>, vector<2x8x128xf32>
    %cst = arith.constant 5.000000e-01 : f32
    %5 = vector.broadcast %cst : f32 to vector<2x8x128xf32>
    %6 = arith.mulf %5, %3 : vector<2x8x128xf32>
    %7 = math.tanh %6 : vector<2x8x128xf32>
    %cst_6 = arith.constant 1.000000e+00 : f32
    %8 = vector.broadcast %cst_6 : f32 to vector<2x8x128xf32>
    %9 = arith.addf %7, %8 : vector<2x8x128xf32>
    %cst_7 = arith.constant 5.000000e-01 : f32
    %10 = vector.broadcast %cst_7 : f32 to vector<2x8x128xf32>
    %11 = arith.mulf %10, %9 : vector<2x8x128xf32>
    %c0_8 = arith.constant 0 : index
    %c0_9 = arith.constant 0 : index
    %12 = vector.load %arg3[%c0_8, %c0_9] : memref<2x128xf32, #tpu.memory_space<vmem>>, vector<2x128xf32>
    %13 = arith.mulf %11, %4 : vector<2x8x128xf32>
    %cst_10 = arith.constant dense<0.000000e+00> : vector<2x128xf32>
    %14 = vector.multi_reduction <add>, %13, %cst_10 [1] : vector<2x8x128xf32> to vector<2x128xf32>
    %15 = arith.addf %12, %14 : vector<2x128xf32>
    %c0_11 = arith.constant 0 : index
    %c0_12 = arith.constant 0 : index
    %16 = vector.load %arg3[%c0_11, %c0_12] : memref<2x128xf32, #tpu.memory_space<vmem>>, vector<2x128xf32>
    tpu.vector_store %arg3[%c0_11, %c0_12], %15 {strides = array<i32>} : memref<2x128xf32, #tpu.memory_space<vmem>>, vector<2x128xf32>,
    %c0_13 = arith.constant 0 : index
    %c0_14 = arith.constant 0 : index
    %17 = vector.load %arg4[%c0_13, %c0_14] : memref<2x128xf32, #tpu.memory_space<vmem>>, vector<2x128xf32>
    %18 = arith.addf %11, %4 : vector<2x8x128xf32>
    %cst_15 = arith.constant dense<0.000000e+00> : vector<2x128xf32>
    %19 = vector.multi_reduction <add>, %18, %cst_15 [1] : vector<2x8x128xf32> to vector<2x128xf32>
    %20 = arith.addf %17, %19 : vector<2x128xf32>
    %c0_16 = arith.constant 0 : index
    %c0_17 = arith.constant 0 : index
    %21 = vector.load %arg4[%c0_16, %c0_17] : memref<2x128xf32, #tpu.memory_space<vmem>>, vector<2x128xf32>
    tpu.vector_store %arg4[%c0_16, %c0_17], %20 {strides = array<i32>} : memref<2x128xf32, #tpu.memory_space<vmem>>, vector<2x128xf32>,
    return
  }
  func.func @transform_0(%arg0: i32) -> (i32, i32, i32) {
    %c0_i32 = arith.constant 0 : i32
    %c0_i32_0 = arith.constant 0 : i32
    %c0_i32_1 = arith.constant 0 : i32
    return %c0_i32, %arg0, %c0_i32_0 : i32, i32, i32
  }
  func.func @transform_1(%arg0: i32) -> (i32, i32, i32) {
    %c0_i32 = arith.constant 0 : i32
    %c0_i32_0 = arith.constant 0 : i32
    %c0_i32_1 = arith.constant 0 : i32
    return %c0_i32, %arg0, %c0_i32_0 : i32, i32, i32
  }
  func.func @transform_2(%arg0: i32) -> (i32, i32) {
    %c0_i32 = arith.constant 0 : i32
    %c0_i32_0 = arith.constant 0 : i32
    %c0_i32_1 = arith.constant 0 : i32
    return %c0_i32, %c0_i32_0 : i32, i32
  }
  func.func @transform_3(%arg0: i32) -> (i32, i32) {
    %c0_i32 = arith.constant 0 : i32
    %c0_i32_0 = arith.constant 0 : i32
    %c0_i32_1 = arith.constant 0 : i32
    return %c0_i32, %c0_i32_0 : i32, i32
  }
}

</mosaic_0001>

<llo_original>
// kernel: tpu_custom_call.1
$region0: #{tpu_custom_call.1}
  #allocation0 [shape = 'u32[]', space=smem, size = 0x4, offset = 0x4, fixed_abs, tag = 'smem constant byte address 0x4 - core index']
  #allocation1 [shape = 'u32[144,128]{1,0:T(1,128)}', space=vmem, size = 0x12000, scoped, tag = 'internal scratch']
  %s0 = inlined_call_operand.hbm [shape: f32[2,8,128], index: 0, kind: input, shape index: {}]
  %s1 = inlined_call_operand.hbm [shape: f32[2,8,128], index: 1, kind: input, shape index: {}]
  %s2 = inlined_call_operand.hbm [shape: f32[2,128], index: 2, kind: output, shape index: {0}]
  %s3 = inlined_call_operand.hbm [shape: f32[2,128], index: 3, kind: output, shape index: {1}]
  %4 = xla_tuple %s2, %s3
  %s5 = sld [smem:[#allocation0]]
  $region38: #{tpu_custom_call.1} parent=0
    _
  %s7 = ssub.s32 1, %s5
  %s8 = scalar_select 0, %s7, %s5
  $region1: #{tpu_custom_call.1} parent=0
    #allocation2 [shape = 'u8[8192]{0}', space=vmem, size = 0x2000, scoped, tag = 'input window, operand 0, single buffered']
    #allocation3 [shape = 's32[1]{0}', space=sflag, size = 0x4, scoped, tag = 'scoped memory for tpu_custom_call.1']
    #allocation4 [shape = 's32[1]{0}', space=sflag, size = 0x4, scoped, tag = 'scoped memory for tpu_custom_call.1']
    #allocation5 [shape = 'u8[8192]{0}', space=vmem, size = 0x2000, scoped, tag = 'input window, operand 1, single buffered']
    #allocation6 [shape = 's32[1]{0}', space=sflag, size = 0x4, scoped, tag = 'scoped memory for tpu_custom_call.1']
    #allocation7 [shape = 'u8[1024]{0}', space=vmem, size = 0x400, scoped, tag = 'output window, operand 0, single buffered']
    #allocation8 [shape = 'u8[1024]{0}', space=vmem, size = 0x400, scoped, tag = 'output window, operand 1, single buffered']
    #allocation9 [shape = 's32[1]{0}', space=sflag, size = 0x4, scoped, tag = 'scoped memory for tpu_custom_call.1']
    %9 = vsyncpa [#allocation3], 0
    %10 = vsyncpa [#allocation6], 0
    %11 = vsyncpa [#allocation4], 0
    %12 = vsyncpa [#allocation9], 0
    // Predicated region
    $region2: #{tpu_custom_call.1} parent=1 // pred_check
      _
    $region3: #{tpu_custom_call.1} parent=1 // pred_check_branch
      %14 = sbr.rel (0) target = $region5
    $region4: #{tpu_custom_call.1} parent=1 // pred_region
      %s16 = ssub.s32 256, 256
      %17 = vsyncadd [#allocation3], %s16
      %s18 = sshll.u32 [#allocation2], 4
      %s19 = int_to_ptr.vmem [resolvable:$true] %s18
      %24 = dma.hbm_to_vmem [thread:$0]  %s0, 256, %s19, [#allocation3], 128, 128, 8
    $region5: #{tpu_custom_call.1} parent=1 // pred_fallthru
      _
    // Predicated region
    $region6: #{tpu_custom_call.1} parent=1 // pred_check
      _
    $region7: #{tpu_custom_call.1} parent=1 // pred_check_branch
      %26 = sbr.rel (0) target = $region9
    $region8: #{tpu_custom_call.1} parent=1 // pred_region
      %s28 = ssub.s32 256, 256
      %29 = vsyncadd [#allocation6], %s28
      %s30 = sshll.u32 [#allocation5], 4
      %s31 = int_to_ptr.vmem [resolvable:$true] %s30
      %36 = dma.hbm_to_vmem [thread:$0]  %s1, 256, %s31, [#allocation6], 128, 128, 8
    $region9: #{tpu_custom_call.1} parent=1 // pred_fallthru
      _
    // Predicated region
    $region10: #{tpu_custom_call.1} parent=1 // pred_check
      _
    $region11: #{tpu_custom_call.1} parent=1 // pred_check_branch
      %38 = sbr.rel (0) target = $region13
    $region12: #{tpu_custom_call.1} parent=1 // pred_region
      %39 = dma.done [#allocation3], 256
    $region13: #{tpu_custom_call.1} parent=1 // pred_fallthru
      _
    // Predicated region
    $region14: #{tpu_custom_call.1} parent=1 // pred_check
      _
    $region15: #{tpu_custom_call.1} parent=1 // pred_check_branch
      %41 = sbr.rel (0) target = $region17
    $region16: #{tpu_custom_call.1} parent=1 // pred_region
      %42 = dma.done [#allocation6], 256
    $region17: #{tpu_custom_call.1} parent=1 // pred_fallthru
      _
    %p43 = scmp.eq.s32.totalorder 0, 0
    // Predicated region
    $region18: #{tpu_custom_call.1} parent=1 // pred_check
      %p44 = pneg %p43
    $region19: #{tpu_custom_call.1} parent=1 // pred_check_branch
      %46 = sbr.rel (%p44) target = $region21
    $region20: #{tpu_custom_call.1} parent=1 // pred_region
      %47 = vst [vmem:[#allocation7] sm:$0x3] 0.0
      %48 = vst [vmem:[#allocation8] sm:$0x3] 0.0
    $region21: #{tpu_custom_call.1} parent=1 // pred_fallthru
      _
    %v49 = vld [vmem:[#allocation2] sm:$0xff]
    %v50 = vld [vmem:[#allocation2 + $0x8] sm:$0xff]
    %v51 = vld [vmem:[#allocation5] sm:$0xff]
    %v52 = vld [vmem:[#allocation5 + $0x8] sm:$0xff]
    %v53 = vmul.f32 %v49, 0.5
    %v54 = vmul.f32 %v50, 0.5
    %v55 = vtanh.pop %v53
    %v56 = vtanh.pop %v54
    %v57 = vadd.f32 %v55, 1.0
    %v58 = vadd.f32 %v56, 1.0
    %v59 = vmul.f32 %v57, 0.5
    %v60 = vmul.f32 %v58, 0.5
    %v61 = vld [vmem:[#allocation7] sm:$0x3]
    %v62 = vmul.f32 %v59, %v51
    %v63 = vmul.f32 %v60, %v52
    %v64 = vrot.slane %v62, 4
    %v65 = vadd.f32 %v62, %v64
    %v66 = vrot.slane %v65, 2
    %v67 = vadd.f32 %v65, %v66
    %v68 = vrot.slane %v67, 1
    %v69 = vadd.f32 %v67, %v68
    %v70 = vrot.slane %v63, 4
    %v71 = vadd.f32 %v63, %v70
    %v72 = vrot.slane %v71, 2
    %v73 = vadd.f32 %v71, %v72
    %v74 = vrot.slane %v73, 1
    %v75 = vadd.f32 %v73, %v74
    %vm78 = vcmask 1041409
    %v79 = vsel %vm78, %v75, %v69
    %v81 = vadd.f32 %v61, %v79
    %82 = vst [vmem:[#allocation7] sm:$0x3] %v81
    %v83 = vld [vmem:[#allocation8] sm:$0x3]
    %v84 = vadd.f32 %v59, %v51
    %v85 = vadd.f32 %v60, %v52
    %v86 = vrot.slane %v84, 4
    %v87 = vadd.f32 %v84, %v86
    %v88 = vrot.slane %v87, 2
    %v89 = vadd.f32 %v87, %v88
    %v90 = vrot.slane %v89, 1
    %v91 = vadd.f32 %v89, %v90
    %v92 = vrot.slane %v85, 4
    %v93 = vadd.f32 %v85, %v92
    %v94 = vrot.slane %v93, 2
    %v95 = vadd.f32 %v93, %v94
    %v96 = vrot.slane %v95, 1
    %v97 = vadd.f32 %v95, %v96
    %v100 = vsel %vm78, %v97, %v91
    %v102 = vadd.f32 %v83, %v100
    %103 = vst [vmem:[#allocation8] sm:$0x3] %v102
    // Predicated region
    $region22: #{tpu_custom_call.1} parent=1 // pred_check
      _
    $region23: #{tpu_custom_call.1} parent=1 // pred_check_branch
      %105 = sbr.rel (0) target = $region25
    $region24: #{tpu_custom_call.1} parent=1 // pred_region
      %s107 = ssub.s32 32, 32
      %108 = vsyncadd [#allocation4], %s107
      %s110 = sshll.u32 [#allocation7], 4
      %s111 = int_to_ptr.vmem [resolvable:$true] %s110
      %113 = dma.vmem_to_hbm [thread:$0]  %s111, 32, %s2, [#allocation4]
    $region25: #{tpu_custom_call.1} parent=1 // pred_fallthru
      _
    // Predicated region
    $region26: #{tpu_custom_call.1} parent=1 // pred_check
      _
    $region27: #{tpu_custom_call.1} parent=1 // pred_check_branch
      %115 = sbr.rel (0) target = $region29
    $region28: #{tpu_custom_call.1} parent=1 // pred_region
      %s117 = ssub.s32 32, 32
      %118 = vsyncadd [#allocation9], %s117
      %s120 = sshll.u32 [#allocation8], 4
      %s121 = int_to_ptr.vmem [resolvable:$true] %s120
      %123 = dma.vmem_to_hbm [thread:$0]  %s121, 32, %s3, [#allocation9]
    $region29: #{tpu_custom_call.1} parent=1 // pred_fallthru
      _
    // Predicated region
    $region30: #{tpu_custom_call.1} parent=1 // pred_check
      _
    $region31: #{tpu_custom_call.1} parent=1 // pred_check_branch
      %125 = sbr.rel (0) target = $region33
    $region32: #{tpu_custom_call.1} parent=1 // pred_region
      %126 = dma.done [#allocation4], 32
    $region33: #{tpu_custom_call.1} parent=1 // pred_fallthru
      _
    // Predicated region
    $region34: #{tpu_custom_call.1} parent=1 // pred_check
      _
    $region35: #{tpu_custom_call.1} parent=1 // pred_check_branch
      %128 = sbr.rel (0) target = $region37
    $region36: #{tpu_custom_call.1} parent=1 // pred_region
      %129 = dma.done [#allocation9], 32
    $region37: #{tpu_custom_call.1} parent=1 // pred_fallthru
      _
    %130 = vsyncpa [#allocation3], 1
    %131 = vsyncpa [#allocation6], 1
    %132 = vsyncpa [#allocation4], 1
    %133 = vsyncpa [#allocation9], 1

</llo_original>
